<compile_context>
chip_gen: v7x
topology: tpu7x:2x2x1
jax: 0.10.0
libtpu: 0.0.40
codegen_flags: <defaults>
</compile_context>

<pallas_src>
import jax
import jax.numpy as jnp
from jax import lax
from jax.experimental import pallas as pl
from jax.experimental.pallas import tpu as pltpu


def codebook_kernel(x_ref, keys_ref, keys_sq_ref, values_ref, out_ref):
    """One grid step: TB batch rows against the full (resident) codebook."""
    x = x_ref[...]            # [TB, C_in]  f32
    keys = keys_ref[...]      # [K,  C_in]  f32
    keys_sq = keys_sq_ref[...]  # [1, K]    f32   (precomputed ||k||^2)
    vals = values_ref[...]    # [K,  C_out] f32

    # scores[b, k] = ||k||^2 - 2 * x[b] . keys[k]
    # Same argmin as sqrt(sum((x-k)^2)): ||x||^2 is row-constant, sqrt monotonic.
    # MXU matmul, contracting C_in (no explicit transpose of keys needed).
    xk = lax.dot_general(
        x, keys,
        dimension_numbers=(((1,), (1,)), ((), ())),
        preferred_element_type=jnp.float32,
    )                                               # [TB, K]
    scores = keys_sq - 2.0 * xk                     # [TB, K]

    # argmin with first-occurrence tie-break (matches torch.argmin)
    min_idx = jnp.argmin(scores, axis=-1)           # [TB] int32

    # Gather values[min_idx] via one-hot matmul on the MXU (exact: 1.0 * value).
    iota_k = lax.broadcasted_iota(jnp.int32, scores.shape, 1)     # [TB, K]
    one_hot = (iota_k == min_idx[:, None]).astype(vals.dtype)     # [TB, K]
    out = jnp.dot(one_hot, vals, preferred_element_type=jnp.float32)
    out_ref[...] = out.astype(out_ref.dtype)


def _round_up(a, m):
    return ((a + m - 1) // m) * m


def codebook_forward(x, keys, values, *, tb=512):
    """x: [B, C_in]; keys: [K, C_in]; values: [K, C_out] -> [B, C_out] (f32)."""
    x = x.astype(jnp.float32)
    keys = keys.astype(jnp.float32)
    values = values.astype(jnp.float32)

    B, c_in = x.shape
    K, c_out = values.shape

    # Hoisted codebook squared norms: [1, K]
    keys_sq = jnp.sum(keys * keys, axis=-1)[None, :]

    # --- choose batch tile: multiple of 8 (f32 sublane), no bigger than the
    # padded batch, and shrunk until the per-step VMEM footprint fits a
    # conservative budget (keys/values stay resident; x/out double-buffered).
    def footprint_bytes(t):
        x_b = 2 * t * c_in * 4          # double-buffered x tile
        o_b = 2 * t * c_out * 4         # double-buffered out tile
        cb_b = 2 * (K * c_in + K * c_out + K) * 4  # codebook (default 2x buffered)
        return x_b + o_b + cb_b

    tb = max(8, min(_round_up(tb, 8), _round_up(B, 8)))
    budget = 24 << 20                   # leaves headroom on v7x's 64 MiB VMEM
    while tb > 8 and footprint_bytes(tb) > budget:
        tb -= 8

    # Pad batch to a multiple of the tile; padded rows are sliced away below.
    b_pad = _round_up(B, tb)
    if b_pad != B:
        x = jnp.pad(x, ((0, b_pad - B), (0, 0)))

    vmem_limit = int(min(max(2 * footprint_bytes(tb) + (4 << 20), 32 << 20), 64 << 20))

    # NOTE(v7x): keys/values/keys_sq are grid-invariant (index_map always (0,0));
    # if the codebook grows large, single-buffer them (pipeline_mode=pl.Buffered(1))
    # or add a K grid axis with a running (min_score, min_idx) accumulator.
    out = pl.pallas_call(
        codebook_kernel,
        out_shape=jax.ShapeDtypeStruct((b_pad, c_out), jnp.float32),
        grid_spec=pltpu.PrefetchScalarGridSpec(
            num_scalar_prefetch=0,
            grid=(b_pad // tb,),
            in_specs=[
                pl.BlockSpec((tb, c_in), lambda i: (i, 0)),    # x tile
                pl.BlockSpec((K, c_in), lambda i: (0, 0)),     # full keys
                pl.BlockSpec((1, K), lambda i: (0, 0)),        # ||k||^2
                pl.BlockSpec((K, c_out), lambda i: (0, 0)),    # full values
            ],
            out_specs=pl.BlockSpec((tb, c_out), lambda i: (i, 0)),
        ),
        compiler_params=pltpu.CompilerParams(
            dimension_semantics=("parallel",),   # batch tiles shard across TCs (v7x)
            vmem_limit_bytes=vmem_limit,
        ),
    )(x, keys, keys_sq, values)

    return out[:B]


def codebook_reference(x, keys, values):
    """Pure-JAX reference matching the PyTorch forward exactly."""
    diff = x[:, None, :] - keys[None, :, :]
    dist = jnp.sqrt(jnp.sum(diff * diff, axis=-1))
    min_idx = jnp.argmin(dist, axis=-1)
    return values[min_idx]


if __name__ == "__main__":
    # Module config (small, consistent with __init__ shapes)
    input_channel = 32
    output_channel = 32
    kvpairs_num = 8
    batch_size = 8

    key = jax.random.PRNGKey(0)
    k_keys, k_vals, k_x = jax.random.split(key, 3)

    # Deterministic "parameters" mirroring the torch init:
    #   keys   = (rand([K, C_in]) - 0.5) * 3
    #   values = randn([K, C_out])
    keys = (jax.random.uniform(k_keys, (kvpairs_num, input_channel),
                               dtype=jnp.float32) - 0.5) * 3.0
    values = jax.random.normal(k_vals, (kvpairs_num, output_channel),
                               dtype=jnp.float32)

    # Example input
    x = jax.random.normal(k_x, (batch_size, input_channel), dtype=jnp.float32)

    y = codebook_forward(x, keys, values)
    y = jax.block_until_ready(y)

    y_ref = codebook_reference(x, keys, values)
    assert y.shape == (batch_size, output_channel)
    assert jnp.allclose(y, y_ref, atol=1e-5, rtol=1e-5), "mismatch vs reference"

    print("KERNEL_OK")
</pallas_src>

<mosaic_0001>
module attributes {stable_mosaic.version = 11 : i64} {
  func.func @codebook_kernel(%arg0: i32, %arg1: memref<8x32xf32, #tpu.memory_space<vmem>>, %arg2: memref<8x32xf32, #tpu.memory_space<vmem>>, %arg3: memref<1x8xf32, #tpu.memory_space<vmem>>, %arg4: memref<8x32xf32, #tpu.memory_space<vmem>>, %arg5: memref<8x32xf32, #tpu.memory_space<vmem>>) attributes {dimension_semantics = [#tpu.dimension_semantics<parallel>], iteration_bounds = array<i64: 1>, scalar_prefetch = 0 : i64, scratch_operands = 0 : i64, tpu.core_type = #tpu.core_type<tc>, window_params = [{transform_indices = @transform_0, window_bounds = array<i64: 8, 32>}, {pipeline_mode = #tpu.pipeline_mode<synchronous>, transform_indices = @transform_1, window_bounds = array<i64: 8, 32>}, {pipeline_mode = #tpu.pipeline_mode<synchronous>, transform_indices = @transform_2, window_bounds = array<i64: 1, 8>}, {pipeline_mode = #tpu.pipeline_mode<synchronous>, transform_indices = @transform_3, window_bounds = array<i64: 8, 32>}, {transform_indices = @transform_4, window_bounds = array<i64: 8, 32>}]} {
    %c0 = arith.constant 0 : index
    %c0_0 = arith.constant 0 : index
    %0 = vector.load %arg1[%c0, %c0_0] : memref<8x32xf32, #tpu.memory_space<vmem>>, vector<8x32xf32>
    %c0_1 = arith.constant 0 : index
    %c0_2 = arith.constant 0 : index
    %1 = vector.load %arg2[%c0_1, %c0_2] : memref<8x32xf32, #tpu.memory_space<vmem>>, vector<8x32xf32>
    %c0_3 = arith.constant 0 : index
    %c0_4 = arith.constant 0 : index
    %2 = vector.load %arg3[%c0_3, %c0_4] : memref<1x8xf32, #tpu.memory_space<vmem>>, vector<1x8xf32>
    %c0_5 = arith.constant 0 : index
    %c0_6 = arith.constant 0 : index
    %3 = vector.load %arg4[%c0_5, %c0_6] : memref<8x32xf32, #tpu.memory_space<vmem>>, vector<8x32xf32>
    %cst = arith.constant dense<0.000000e+00> : vector<8x8xf32>
    %4 = tpu.matmul %0, %1, %cst {dimension_numbers = #tpu.dot_dimension_numbers<[1], [1], [0], [0], [0, 0, 1, 0], [], []>} : vector<8x32xf32>, vector<8x32xf32>, vector<8x8xf32> -> vector<8x8xf32>
    %cst_7 = arith.constant 2.000000e+00 : f32
    %5 = vector.broadcast %cst_7 : f32 to vector<8x8xf32>
    %6 = arith.mulf %5, %4 : vector<8x8xf32>
    %7 = vector.broadcast %2 : vector<1x8xf32> to vector<8x8xf32>
    %8 = arith.subf %7, %6 : vector<8x8xf32>
    %9 = tpu.reduce_index %8 {axis = 1 : i32, kind = #tpu.reduction_kind<arg_min>} : vector<8x8xf32> -> vector<8xi32>
    %10 = tpu.iota {dimensions = array<i32: 1>} : vector<8x8xi32>
    %11 = vector.shape_cast %9 : vector<8xi32> to vector<8x1xi32>
    %12 = vector.broadcast %11 : vector<8x1xi32> to vector<8x8xi32>
    %13 = arith.cmpi eq, %10, %12 : vector<8x8xi32>
    %14 = arith.extui %13 : vector<8x8xi1> to vector<8x8xi32>
    %15 = arith.sitofp %14 : vector<8x8xi32> to vector<8x8xf32>
    %cst_8 = arith.constant dense<0.000000e+00> : vector<8x32xf32>
    %16 = tpu.matmul %15, %3, %cst_8 {dimension_numbers = #tpu.dot_dimension_numbers<[1], [0], [0], [1], [0, 0, 1, 1], [], []>} : vector<8x8xf32>, vector<8x32xf32>, vector<8x32xf32> -> vector<8x32xf32>
    %c0_9 = arith.constant 0 : index
    %c0_10 = arith.constant 0 : index
    %17 = vector.load %arg5[%c0_9, %c0_10] : memref<8x32xf32, #tpu.memory_space<vmem>>, vector<8x32xf32>
    tpu.vector_store %arg5[%c0_9, %c0_10], %16 {strides = array<i32>} : memref<8x32xf32, #tpu.memory_space<vmem>>, vector<8x32xf32>,
    return
  }
  func.func @transform_0(%arg0: i32) -> (i32, i32) {
    %c0_i32 = arith.constant 0 : i32
    %c0_i32_0 = arith.constant 0 : i32
    return %arg0, %c0_i32 : i32, i32
  }
  func.func @transform_1(%arg0: i32) -> (i32, i32) {
    %c0_i32 = arith.constant 0 : i32
    %c0_i32_0 = arith.constant 0 : i32
    %c0_i32_1 = arith.constant 0 : i32
    return %c0_i32, %c0_i32_0 : i32, i32
  }
  func.func @transform_2(%arg0: i32) -> (i32, i32) {
    %c0_i32 = arith.constant 0 : i32
    %c0_i32_0 = arith.constant 0 : i32
    %c0_i32_1 = arith.constant 0 : i32
    return %c0_i32, %c0_i32_0 : i32, i32
  }
  func.func @transform_3(%arg0: i32) -> (i32, i32) {
    %c0_i32 = arith.constant 0 : i32
    %c0_i32_0 = arith.constant 0 : i32
    %c0_i32_1 = arith.constant 0 : i32
    return %c0_i32, %c0_i32_0 : i32, i32
  }
  func.func @transform_4(%arg0: i32) -> (i32, i32) {
    %c0_i32 = arith.constant 0 : i32
    %c0_i32_0 = arith.constant 0 : i32
    return %arg0, %c0_i32 : i32, i32
  }
}

</mosaic_0001>

<llo_original>
// kernel: tpu_custom_call.1
$region0: #{tpu_custom_call.1}
  #allocation0 [shape = 'u32[]', space=smem, size = 0x4, offset = 0x4, fixed_abs, tag = 'smem constant byte address 0x4 - core index']
  #allocation1 [shape = 'u32[144,128]{1,0:T(1,128)}', space=vmem, size = 0x12000, scoped, tag = 'internal scratch']
  %s0 = inlined_call_operand.hbm [shape: f32[8,32], index: 0, kind: input, shape index: {}]
  %s1 = inlined_call_operand.hbm [shape: f32[8,32], index: 1, kind: input, shape index: {}]
  %s2 = inlined_call_operand.vmem [shape: f32[1,8], index: 2, kind: input, shape index: {}]
  %s3 = inlined_call_operand.vmem [shape: f32[8,32], index: 3, kind: input, shape index: {}]
  %s4 = inlined_call_operand.hbm [shape: f32[8,32], index: 4, kind: output, shape index: {}]
  %s5 = sld [smem:[#allocation0]]
  $region34: #{tpu_custom_call.1} parent=0
    _
  %s7 = ssub.s32 1, %s5
  %s8 = scalar_select 0, %s7, %s5
  $region1: #{tpu_custom_call.1} parent=0
    #allocation2 [shape = 'u8[4096]{0}', space=vmem, size = 0x1000, scoped, tag = 'input window, operand 0, single buffered']
    #allocation3 [shape = 's32[1]{0}', space=sflag, size = 0x4, scoped, tag = 'scoped memory for tpu_custom_call.1']
    #allocation4 [shape = 's32[1]{0}', space=sflag, size = 0x4, scoped, tag = 'scoped memory for tpu_custom_call.1']
    #allocation5 [shape = 'u8[4096]{0}', space=vmem, size = 0x1000, scoped, tag = 'input window, operand 1, single buffered']
    #allocation6 [shape = 's32[1]{0}', space=sflag, size = 0x4, scoped, tag = 'scoped memory for tpu_custom_call.1']
    #allocation7 [shape = 'u8[4096]{0}', space=vmem, size = 0x1000, scoped, tag = 'output window, operand 0, single buffered']
    %9 = vsyncpa [#allocation3], 0
    %10 = vsyncpa [#allocation6], 0
    %11 = vsyncpa [#allocation4], 0
    // Predicated region
    $region2: #{tpu_custom_call.1} parent=1 // pred_check
      _
    $region3: #{tpu_custom_call.1} parent=1 // pred_check_branch
      %13 = sbr.rel (0) target = $region5
    $region4: #{tpu_custom_call.1} parent=1 // pred_region
      %s15 = ssub.s32 128, 128
      %16 = vsyncadd [#allocation3], %s15
      %s18 = sshll.u32 [#allocation2], 4
      %s19 = int_to_ptr.vmem [resolvable:$true] %s18
      %21 = dma.hbm_to_vmem [thread:$0]  %s0, 128, %s19, [#allocation3]
    $region5: #{tpu_custom_call.1} parent=1 // pred_fallthru
      _
    // Predicated region
    $region6: #{tpu_custom_call.1} parent=1 // pred_check
      _
    $region7: #{tpu_custom_call.1} parent=1 // pred_check_branch
      %23 = sbr.rel (0) target = $region9
    $region8: #{tpu_custom_call.1} parent=1 // pred_region
      %s25 = ssub.s32 128, 128
      %26 = vsyncadd [#allocation6], %s25
      %s28 = sshll.u32 [#allocation5], 4
      %s29 = int_to_ptr.vmem [resolvable:$true] %s28
      %31 = dma.hbm_to_vmem [thread:$0]  %s1, 128, %s29, [#allocation6]
    $region9: #{tpu_custom_call.1} parent=1 // pred_fallthru
      _
    // Predicated region
    $region10: #{tpu_custom_call.1} parent=1 // pred_check
      _
    $region11: #{tpu_custom_call.1} parent=1 // pred_check_branch
      %33 = sbr.rel (0) target = $region13
    $region12: #{tpu_custom_call.1} parent=1 // pred_region
      _
    $region13: #{tpu_custom_call.1} parent=1 // pred_fallthru
      _
    // Predicated region
    $region14: #{tpu_custom_call.1} parent=1 // pred_check
      _
    $region15: #{tpu_custom_call.1} parent=1 // pred_check_branch
      %35 = sbr.rel (0) target = $region17
    $region16: #{tpu_custom_call.1} parent=1 // pred_region
      _
    $region17: #{tpu_custom_call.1} parent=1 // pred_fallthru
      _
    // Predicated region
    $region18: #{tpu_custom_call.1} parent=1 // pred_check
      _
    $region19: #{tpu_custom_call.1} parent=1 // pred_check_branch
      %37 = sbr.rel (0) target = $region21
    $region20: #{tpu_custom_call.1} parent=1 // pred_region
      %38 = dma.done [#allocation3], 128
    $region21: #{tpu_custom_call.1} parent=1 // pred_fallthru
      _
    // Predicated region
    $region22: #{tpu_custom_call.1} parent=1 // pred_check
      _
    $region23: #{tpu_custom_call.1} parent=1 // pred_check_branch
      %40 = sbr.rel (0) target = $region25
    $region24: #{tpu_custom_call.1} parent=1 // pred_region
      %41 = dma.done [#allocation6], 128
    $region25: #{tpu_custom_call.1} parent=1 // pred_fallthru
      _
    %v42 = vld [vmem:[#allocation2] sm:$0xff]
    %v43 = vld [vmem:[#allocation5] sm:$0xff]
    %v44 = vld [vmem:[%s2] sm:$0x1]
    %v45 = vld [vmem:[%s3] sm:$0xff]
    %vm46 = vcmask 261120
    %v48 = vsel %vm46, %v42, 0
    %v51 = vsel %vm46, %v43, 0
    %53 = vmatprep.subr.mxu0 0.0
    %54 = vmatpush1.xpose.msra.mxu0 %v51
    %55 = vmatprep.subr.mxu0 0.0
    %56 = vmatpush1.xpose.msra.mxu0 0.0
    %57 = vmatprep.subr.mxu0 0.0
    %58 = vmatpush1.xpose.msra.mxu0 0.0
    %59 = vmatprep.subr.mxu0 0.0
    %60 = vmatpush1.xpose.msra.mxu0 0.0
    %61 = vmatprep.subr.mxu0 0.0
    %62 = vmatpush1.xpose.msra.mxu0 0.0
    %63 = vmatprep.subr.mxu0 0.0
    %64 = vmatpush1.xpose.msra.mxu0 0.0
    %65 = vmatprep.subr.mxu0 0.0
    %66 = vmatpush1.xpose.msra.mxu0 0.0
    %67 = vmatprep.subr.mxu0 0.0
    %68 = vmatpush1.xpose.msra.mxu0 0.0
    %69 = vmatprep.subr.mxu0 0.0
    %70 = vmatpush1.xpose.msra.mxu0 0.0
    %71 = vmatprep.subr.mxu0 0.0
    %72 = vmatpush1.xpose.msra.mxu0 0.0
    %73 = vmatprep.subr.mxu0 0.0
    %74 = vmatpush1.xpose.msra.mxu0 0.0
    %75 = vmatprep.subr.mxu0 0.0
    %76 = vmatpush1.xpose.msra.mxu0 0.0
    %77 = vmatprep.subr.mxu0 0.0
    %78 = vmatpush1.xpose.msra.mxu0 0.0
    %79 = vmatprep.subr.mxu0 0.0
    %80 = vmatpush1.xpose.msra.mxu0 0.0
    %81 = vmatprep.subr.mxu0 0.0
    %82 = vmatpush1.xpose.msra.mxu0 0.0
    %83 = vmatprep.subr.mxu0 0.0
    %84 = vmatpush1.xpose.msra.mxu0 0.0
    %85 = vmatprep.subr.mxu0 0.0
    %86 = vmatpush1.xpose.msra.mxu0 0.0
    %87 = vmatprep.subr.mxu0 0.0
    %88 = vmatpush1.xpose.msra.mxu0 0.0
    %89 = vmatprep.subr.mxu0 0.0
    %90 = vmatpush1.xpose.msra.mxu0 0.0
    %91 = vmatprep.subr.mxu0 0.0
    %92 = vmatpush1.xpose.msra.mxu0 0.0
    %93 = vmatprep.subr.mxu0 0.0
    %94 = vmatpush1.xpose.msra.mxu0 0.0
    %95 = vmatprep.subr.mxu0 0.0
    %96 = vmatpush1.xpose.msra.mxu0 0.0
    %97 = vmatprep.subr.mxu0 0.0
    %98 = vmatpush1.xpose.msra.mxu0 0.0
    %99 = vmatprep.subr.mxu0 0.0
    %100 = vmatpush1.xpose.msra.mxu0 0.0
    %101 = vmatprep.subr.mxu0 0.0
    %102 = vmatpush1.xpose.msra.mxu0 0.0
    %103 = vmatprep.subr.mxu0 0.0
    %104 = vmatpush1.xpose.msra.mxu0 0.0
    %105 = vmatprep.subr.mxu0 0.0
    %106 = vmatpush1.xpose.msra.mxu0 0.0
    %107 = vmatprep.subr.mxu0 0.0
    %108 = vmatpush1.xpose.msra.mxu0 0.0
    %109 = vmatprep.subr.mxu0 0.0
    %110 = vmatpush1.xpose.msra.mxu0 0.0
    %111 = vmatprep.subr.mxu0 0.0
    %112 = vmatpush1.xpose.msra.mxu0 0.0
    %113 = vmatprep.subr.mxu0 0.0
    %114 = vmatpush1.xpose.msra.mxu0 0.0
    %115 = vmatprep.subr.mxu0 0.0
    %116 = vmatpush1.xpose.msra.mxu0 0.0
    %117 = vmatprep.mubr.f32.mxu0 0.0
    %118 = vmatmul.mubr.f32.gmra.mrb[0].mxu0 %v48
    %v119 = vpop.f32.mrb[0].mxu0
    %v120 = vadd.f32 0.0, %v119
    %v121 = vpop.f32.mrb[0].mxu0
    %122 = vdwg.mxu0
    %v123 = vmul.f32 %v120, 2.0
    %v125 = vlaneseq
    %v126 = vshrl.u32 %v125, 7
    %v127 = vsub.s32 0, %v126
    %v128 = vrot.slane %v44, %v127
    %v130 = vsub.f32 %v128, %v123
    %vm131 = vcmask 64512
    %v132 = vsel %vm131, %v130, inf
    %133 = vmin.index.xlane.f32.xlu0 %v132
    %v134 = vpop.xlane.xlu0 %133
    %v135 = vlaneseq
    %v136 = vand.u32 %v135, 127
    %vm137 = vcmp.eq.s32.totalorder %v136, %v134
    %v138 = vsel %vm137, 1, 0
    %v139 = vcvt.s32.f32 %v138
    %v141 = vsel %vm131, %v139, 0
    %143 = vmatprep.subr.mxu0 0.0
    %144 = vmatpush1.msra.mxu0 %v45
    %145 = vmatprep.subr.mxu0 0.0
    %146 = vmatpush1.msra.mxu0 0.0
    %147 = vmatprep.subr.mxu0 0.0
    %148 = vmatpush1.msra.mxu0 0.0
    %149 = vmatprep.subr.mxu0 0.0
    %150 = vmatpush1.msra.mxu0 0.0
    %151 = vmatprep.subr.mxu0 0.0
    %152 = vmatpush1.msra.mxu0 0.0
    %153 = vmatprep.subr.mxu0 0.0
    %154 = vmatpush1.msra.mxu0 0.0
    %155 = vmatprep.subr.mxu0 0.0
    %156 = vmatpush1.msra.mxu0 0.0
    %157 = vmatprep.subr.mxu0 0.0
    %158 = vmatpush1.msra.mxu0 0.0
    %159 = vmatprep.subr.mxu0 0.0
    %160 = vmatpush1.msra.mxu0 0.0
    %161 = vmatprep.subr.mxu0 0.0
    %162 = vmatpush1.msra.mxu0 0.0
    %163 = vmatprep.subr.mxu0 0.0
    %164 = vmatpush1.msra.mxu0 0.0
    %165 = vmatprep.subr.mxu0 0.0
    %166 = vmatpush1.msra.mxu0 0.0
    %167 = vmatprep.subr.mxu0 0.0
    %168 = vmatpush1.msra.mxu0 0.0
    %169 = vmatprep.subr.mxu0 0.0
    %170 = vmatpush1.msra.mxu0 0.0
    %171 = vmatprep.subr.mxu0 0.0
    %172 = vmatpush1.msra.mxu0 0.0
    %173 = vmatprep.subr.mxu0 0.0
    %174 = vmatpush1.msra.mxu0 0.0
    %175 = vmatprep.subr.mxu0 0.0
    %176 = vmatpush1.msra.mxu0 0.0
    %177 = vmatprep.subr.mxu0 0.0
    %178 = vmatpush1.msra.mxu0 0.0
    %179 = vmatprep.subr.mxu0 0.0
    %180 = vmatpush1.msra.mxu0 0.0
    %181 = vmatprep.subr.mxu0 0.0
    %182 = vmatpush1.msra.mxu0 0.0
    %183 = vmatprep.subr.mxu0 0.0
    %184 = vmatpush1.msra.mxu0 0.0
    %185 = vmatprep.subr.mxu0 0.0
    %186 = vmatpush1.msra.mxu0 0.0
    %187 = vmatprep.subr.mxu0 0.0
    %188 = vmatpush1.msra.mxu0 0.0
    %189 = vmatprep.subr.mxu0 0.0
    %190 = vmatpush1.msra.mxu0 0.0
    %191 = vmatprep.subr.mxu0 0.0
    %192 = vmatpush1.msra.mxu0 0.0
    %193 = vmatprep.subr.mxu0 0.0
    %194 = vmatpush1.msra.mxu0 0.0
    %195 = vmatprep.subr.mxu0 0.0
    %196 = vmatpush1.msra.mxu0 0.0
    %197 = vmatprep.subr.mxu0 0.0
    %198 = vmatpush1.msra.mxu0 0.0
    %199 = vmatprep.subr.mxu0 0.0
    %200 = vmatpush1.msra.mxu0 0.0
    %201 = vmatprep.subr.mxu0 0.0
    %202 = vmatpush1.msra.mxu0 0.0
    %203 = vmatprep.subr.mxu0 0.0
    %204 = vmatpush1.msra.mxu0 0.0
    %205 = vmatprep.subr.mxu0 0.0
    %206 = vmatpush1.msra.mxu0 0.0
    %207 = vmatprep.mubr.f32.mxu0 0.0
    %208 = vmatmul.mubr.f32.gmra.mrb[0].mxu0 %v141
    %v209 = vpop.f32.mrb[0].mxu0
    %v210 = vadd.f32 0.0, %v209
    %v211 = vpop.f32.mrb[0].mxu0
    %212 = vdwg.mxu0
    %213 = vst.msk [vmem:[#allocation7] sm:$0xff] %vm46, %v210
    // Predicated region
    $region26: #{tpu_custom_call.1} parent=1 // pred_check
      _
    $region27: #{tpu_custom_call.1} parent=1 // pred_check_branch
      %215 = sbr.rel (0) target = $region29
    $region28: #{tpu_custom_call.1} parent=1 // pred_region
      %s217 = ssub.s32 128, 128
      %218 = vsyncadd [#allocation4], %s217
      %s220 = sshll.u32 [#allocation7], 4
      %s221 = int_to_ptr.vmem [resolvable:$true] %s220
      %223 = dma.vmem_to_hbm [thread:$0]  %s221, 128, %s4, [#allocation4]
    $region29: #{tpu_custom_call.1} parent=1 // pred_fallthru
      _
    // Predicated region
    $region30: #{tpu_custom_call.1} parent=1 // pred_check
      _
    $region31: #{tpu_custom_call.1} parent=1 // pred_check_branch
      %225 = sbr.rel (0) target = $region33
    $region32: #{tpu_custom_call.1} parent=1 // pred_region
      %226 = dma.done [#allocation4], 128
    $region33: #{tpu_custom_call.1} parent=1 // pred_fallthru
      _
    %227 = vsyncpa [#allocation3], 1
    %228 = vsyncpa [#allocation6], 1
    %229 = vsyncpa [#allocation4], 1

</llo_original>
